<compile_context>
chip_gen: v7x
topology: tpu7x:2x2x1
jax: 0.10.0
libtpu: 0.0.40
codegen_flags: <defaults>
</compile_context>

<pallas_src>
from functools import partial

import jax
import jax.numpy as jnp
from jax import lax
from jax.experimental import pallas as pl
from jax.experimental.pallas import tpu as pltpu


def _conv_bn_relu_kernel(w_ref, bias_ref, x_ref, o_ref, col_ref, *,
                         TH, W_out, K, C_in):
    # w_ref:    (K*K*C_in, C_out_p)        BN-scale-folded conv weights (compute dtype)
    # bias_ref: (1, C_out_p) f32           folded BN bias
    # x_ref:    (1, 1, TH+K-1, Wp, C_in)   zero-padded NHWC input row tile (halo included)
    # o_ref:    (1, 1, TH*W_out, C_out_p)  output tile (lane-dense C_out_p)
    # col_ref:  (TH*W_out, K*K*C_in)       im2col scratch (VMEM)
    THW = TH * W_out
    xp = x_ref[0, 0]                                    # (TH+K-1, Wp, C_in)

    # ---- im2col: K*K shifted-window slabs packed into one column buffer.
    for ky in range(K):
        for kx in range(K):
            j = (ky * K + kx) * C_in
            col_ref[:, j:j + C_in] = (
                xp[ky:ky + TH, kx:kx + W_out, :].reshape(THW, C_in))

    # ---- Single MXU matmul, contraction = K*K*C_in, f32 accumulation.
    acc = jnp.dot(col_ref[...], w_ref[...], preferred_element_type=jnp.float32)

    # ---- Fused inference-BN bias + ReLU, one lane-dense output store.
    o_ref[0, 0] = jnp.maximum(acc + bias_ref[...], 0.0).astype(o_ref.dtype)


def basic_conv2d_relu(x, weight, gamma, beta, running_mean, running_var, *,
                      eps=1e-5, stride=1, padding=0, dilation=1,
                      tile_rows=None, mxu_dtype=None):
    """x: (B, C_in, H, W) NCHW; weight: (C_out, C_in, K, K) OIHW (bias=False).
    BatchNorm is applied in inference mode using running statistics."""
    assert stride == 1 and dilation == 1, (
        "Pallas kernel implements stride=1, dilation=1 only (module defaults).")
    B, C_in, H, W = x.shape
    C_out, C_in_w, K, K2 = weight.shape
    assert C_in_w == C_in and K == K2, "weight shape mismatch"

    PAD = int(padding)
    Hp, Wp = H + 2 * PAD, W + 2 * PAD
    H_out, W_out = Hp - K + 1, Wp - K + 1
    assert H_out > 0 and W_out > 0, "kernel larger than padded input"

    # ---- Spatial row tiling (second grid axis).
    if tile_rows is None:
        tile_rows = max(8, pl.cdiv(512, W_out))     # ~512 output positions / tile
    TH = min(int(tile_rows), H_out)
    nT = pl.cdiv(H_out, TH)
    H_out_pad = nT * TH
    THK = TH + K - 1
    THW = TH * W_out

    # ---- Fold inference BatchNorm into per-channel weight scale + bias (f32).
    scale = (gamma.astype(jnp.float32)
             / jnp.sqrt(running_var.astype(jnp.float32) + eps))           # (C_out,)
    bias = beta.astype(jnp.float32) - running_mean.astype(jnp.float32) * scale

    compute_dtype = jnp.dtype(mxu_dtype) if mxu_dtype is not None else x.dtype

    # OIHW -> HWIO, fold scale, flatten to 2-D, pad C_out to a lane multiple (128).
    KKC = K * K * C_in
    C_out_p = pl.cdiv(C_out, 128) * 128
    w2d = (jnp.transpose(weight.astype(jnp.float32) * scale[:, None, None, None],
                         (2, 3, 1, 0))                                    # (K,K,C_in,C_out)
           .reshape(KKC, C_out))
    w2d = jnp.pad(w2d, ((0, 0), (0, C_out_p - C_out))).astype(compute_dtype)
    bias_p = jnp.pad(bias, (0, C_out_p - C_out)).reshape(1, C_out_p)

    # ---- NHWC + zero padding + overlapped (halo) row tiles: one fused XLA pass.
    x_nhwc = jnp.transpose(x, (0, 2, 3, 1)).astype(compute_dtype)         # (B,H,W,C_in)
    x_pad = jnp.pad(x_nhwc, ((0, 0),
                             (PAD, PAD + (H_out_pad - H_out)),
                             (PAD, PAD),
                             (0, 0)))                  # (B, H_out_pad+K-1, Wp, C_in)
    x_tiles = jnp.stack([x_pad[:, t * TH:t * TH + THK] for t in range(nT)],
                        axis=1)                        # (B, nT, THK, Wp, C_in)

    kernel = partial(_conv_bn_relu_kernel, TH=TH, W_out=W_out, K=K, C_in=C_in)

    grid_spec = pltpu.PrefetchScalarGridSpec(
        num_scalar_prefetch=0,
        grid=(B, nT),
        in_specs=[
            pl.BlockSpec((KKC, C_out_p), lambda b, t: (0, 0)),            # weights
            pl.BlockSpec((1, C_out_p), lambda b, t: (0, 0)),              # BN bias
            pl.BlockSpec((1, 1, THK, Wp, C_in), lambda b, t: (b, t, 0, 0, 0)),
        ],
        out_specs=pl.BlockSpec((1, 1, THW, C_out_p), lambda b, t: (b, t, 0, 0)),
        scratch_shapes=[pltpu.VMEM((THW, KKC), compute_dtype)],
    )

    # ---- Explicit VMEM budget (double-buffered blocks + scratch), capped for v7x.
    in_size = jnp.dtype(compute_dtype).itemsize
    out_size = jnp.dtype(x.dtype).itemsize
    vmem_need = (2 * (THK * Wp * C_in * in_size + THW * C_out_p * out_size)
                 + 2 * (KKC * C_out_p * in_size + C_out_p * 4)
                 + THW * KKC * in_size + (1 << 20))
    vmem_limit = int(min(max(2 * vmem_need, 32 * 1024 * 1024), 64 * 1024 * 1024))

    cost = pl.CostEstimate(
        flops=2 * B * H_out_pad * W_out * KKC * C_out_p
              + 2 * B * H_out_pad * W_out * C_out_p,
        transcendentals=0,
        bytes_accessed=(B * nT * THK * Wp * C_in * in_size      # input tiles (incl. halo)
                        + B * H_out_pad * W_out * C_out_p * out_size   # output
                        + KKC * C_out_p * in_size + C_out_p * 4),      # weights + bias
    )

    y_flat = pl.pallas_call(
        kernel,
        out_shape=jax.ShapeDtypeStruct((B, nT, THW, C_out_p), x.dtype),
        grid_spec=grid_spec,
        compiler_params=pltpu.CompilerParams(
            dimension_semantics=("parallel", "parallel"),
            vmem_limit_bytes=vmem_limit),
        cost_estimate=cost,
    )(w2d, bias_p, x_tiles)

    # ---- Strip row/lane padding, restore NCHW for the caller.
    y = y_flat.reshape(B, H_out_pad, W_out, C_out_p)[:, :H_out, :, :C_out]
    return jnp.transpose(y, (0, 3, 1, 2))


def _reference(x, weight, gamma, beta, running_mean, running_var, eps, padding):
    """Pure-JAX reference matching the PyTorch forward (BN in eval mode)."""
    y = lax.conv_general_dilated(
        x, weight, window_strides=(1, 1),
        padding=((padding, padding), (padding, padding)),
        dimension_numbers=("NCHW", "OIHW", "NCHW"),
        precision=lax.Precision.HIGHEST)
    inv = 1.0 / jnp.sqrt(running_var + eps)
    y = (y - running_mean[None, :, None, None]) * inv[None, :, None, None]
    y = y * gamma[None, :, None, None] + beta[None, :, None, None]
    return jnp.maximum(y, 0.0)


if __name__ == "__main__":
    key = jax.random.PRNGKey(0)
    kx, kw, kg, kb, km, kv = jax.random.split(key, 6)

    B, C_in, C_out, H, W = 2, 4, 16, 16, 16
    K, PADDING = 3, 1
    EPS = 1e-5

    x = jax.random.normal(kx, (B, C_in, H, W), dtype=jnp.float32)
    weight = 0.1 * jax.random.normal(kw, (C_out, C_in, K, K), dtype=jnp.float32)
    gamma = 1.0 + 0.1 * jax.random.normal(kg, (C_out,), dtype=jnp.float32)
    beta = 0.1 * jax.random.normal(kb, (C_out,), dtype=jnp.float32)
    running_mean = 0.05 * jax.random.normal(km, (C_out,), dtype=jnp.float32)
    running_var = 0.5 + jnp.abs(jax.random.normal(kv, (C_out,), dtype=jnp.float32))

    # tile_rows=8 -> 2 row tiles: exercises the spatial grid axis even at this toy size.
    fn = jax.jit(partial(basic_conv2d_relu, eps=EPS, padding=PADDING, tile_rows=8))
    out = jax.block_until_ready(fn(x, weight, gamma, beta, running_mean, running_var))

    ref = _reference(x, weight, gamma, beta, running_mean, running_var, EPS, PADDING)
    assert out.shape == ref.shape, f"shape mismatch: {out.shape} vs {ref.shape}"
    # Tolerance documents default MXU f32 precision (bf16 passes) vs the HIGHEST-precision
    # XLA reference; pass mxu_dtype=jnp.bfloat16 for the v5e/v6e fast path (looser match).
    assert jnp.allclose(out, ref, atol=2e-3, rtol=2e-3), "conv+bn+relu mismatch"

    print("KERNEL_OK")
</pallas_src>

<mosaic_0001>
module attributes {stable_mosaic.version = 11 : i64} {
  func.func @_conv_bn_relu_kernel(%arg0: i32, %arg1: i32, %arg2: memref<36x128xf32, #tpu.memory_space<vmem>>, %arg3: memref<1x128xf32, #tpu.memory_space<vmem>>, %arg4: memref<1x1x10x18x4xf32, #tpu.memory_space<vmem>>, %arg5: memref<1x1x128x128xf32, #tpu.memory_space<vmem>>, %arg6: memref<128x36xf32, #tpu.memory_space<vmem>>) attributes {dimension_semantics = [#tpu.dimension_semantics<parallel>, #tpu.dimension_semantics<parallel>], iteration_bounds = array<i64: 2, 2>, scalar_prefetch = 0 : i64, scratch_operands = 1 : i64, tpu.core_type = #tpu.core_type<tc>, window_params = [{pipeline_mode = #tpu.pipeline_mode<synchronous>, transform_indices = @transform_0, window_bounds = array<i64: 36, 128>}, {pipeline_mode = #tpu.pipeline_mode<synchronous>, transform_indices = @transform_1, window_bounds = array<i64: 1, 128>}, {transform_indices = @transform_2, window_bounds = array<i64: 1, 1, 10, 18, 4>}, {transform_indices = @transform_3, window_bounds = array<i64: 1, 1, 128, 128>}]} {
    %c0 = arith.constant 0 : index
    %c0_0 = arith.constant 0 : index
    %c0_1 = arith.constant 0 : index
    %c0_2 = arith.constant 0 : index
    %c0_3 = arith.constant 0 : index
    %0 = vector.load %arg4[%c0, %c0_0, %c0_1, %c0_2, %c0_3] : memref<1x1x10x18x4xf32, #tpu.memory_space<vmem>>, vector<1x1x10x18x4xf32>
    %1 = vector.shape_cast %0 : vector<1x1x10x18x4xf32> to vector<10x18x4xf32>
    %2 = vector.extract_strided_slice %1 {offsets = [0, 0, 0], sizes = [8, 16, 4], strides = [1, 1, 1]} : vector<10x18x4xf32> to vector<8x16x4xf32>
    %3 = vector.shape_cast %2 : vector<8x16x4xf32> to vector<128x4xf32>
    %c0_4 = arith.constant 0 : index
    %c0_5 = arith.constant 0 : index
    %4 = vector.load %arg6[%c0_4, %c0_5] : memref<128x36xf32, #tpu.memory_space<vmem>>, vector<128x4xf32>
    tpu.vector_store %arg6[%c0_4, %c0_5], %3 {strides = array<i32>} : memref<128x36xf32, #tpu.memory_space<vmem>>, vector<128x4xf32>,
    %5 = vector.extract_strided_slice %1 {offsets = [0, 1, 0], sizes = [8, 16, 4], strides = [1, 1, 1]} : vector<10x18x4xf32> to vector<8x16x4xf32>
    %6 = vector.shape_cast %5 : vector<8x16x4xf32> to vector<128x4xf32>
    %c0_6 = arith.constant 0 : index
    %c4 = arith.constant 4 : index
    %7 = vector.load %arg6[%c0_6, %c4] : memref<128x36xf32, #tpu.memory_space<vmem>>, vector<128x4xf32>
    tpu.vector_store %arg6[%c0_6, %c4], %6 {strides = array<i32>} : memref<128x36xf32, #tpu.memory_space<vmem>>, vector<128x4xf32>,
    %8 = vector.extract_strided_slice %1 {offsets = [0, 2, 0], sizes = [8, 16, 4], strides = [1, 1, 1]} : vector<10x18x4xf32> to vector<8x16x4xf32>
    %9 = vector.shape_cast %8 : vector<8x16x4xf32> to vector<128x4xf32>
    %c0_7 = arith.constant 0 : index
    %c8 = arith.constant 8 : index
    %10 = vector.load %arg6[%c0_7, %c8] : memref<128x36xf32, #tpu.memory_space<vmem>>, vector<128x4xf32>
    tpu.vector_store %arg6[%c0_7, %c8], %9 {strides = array<i32>} : memref<128x36xf32, #tpu.memory_space<vmem>>, vector<128x4xf32>,
    %11 = vector.extract_strided_slice %1 {offsets = [1, 0, 0], sizes = [8, 16, 4], strides = [1, 1, 1]} : vector<10x18x4xf32> to vector<8x16x4xf32>
    %12 = vector.shape_cast %11 : vector<8x16x4xf32> to vector<128x4xf32>
    %c0_8 = arith.constant 0 : index
    %c12 = arith.constant 12 : index
    %13 = vector.load %arg6[%c0_8, %c12] : memref<128x36xf32, #tpu.memory_space<vmem>>, vector<128x4xf32>
    tpu.vector_store %arg6[%c0_8, %c12], %12 {strides = array<i32>} : memref<128x36xf32, #tpu.memory_space<vmem>>, vector<128x4xf32>,
    %14 = vector.extract_strided_slice %1 {offsets = [1, 1, 0], sizes = [8, 16, 4], strides = [1, 1, 1]} : vector<10x18x4xf32> to vector<8x16x4xf32>
    %15 = vector.shape_cast %14 : vector<8x16x4xf32> to vector<128x4xf32>
    %c0_9 = arith.constant 0 : index
    %c16 = arith.constant 16 : index
    %16 = vector.load %arg6[%c0_9, %c16] : memref<128x36xf32, #tpu.memory_space<vmem>>, vector<128x4xf32>
    tpu.vector_store %arg6[%c0_9, %c16], %15 {strides = array<i32>} : memref<128x36xf32, #tpu.memory_space<vmem>>, vector<128x4xf32>,
    %17 = vector.extract_strided_slice %1 {offsets = [1, 2, 0], sizes = [8, 16, 4], strides = [1, 1, 1]} : vector<10x18x4xf32> to vector<8x16x4xf32>
    %18 = vector.shape_cast %17 : vector<8x16x4xf32> to vector<128x4xf32>
    %c0_10 = arith.constant 0 : index
    %c20 = arith.constant 20 : index
    %19 = vector.load %arg6[%c0_10, %c20] : memref<128x36xf32, #tpu.memory_space<vmem>>, vector<128x4xf32>
    tpu.vector_store %arg6[%c0_10, %c20], %18 {strides = array<i32>} : memref<128x36xf32, #tpu.memory_space<vmem>>, vector<128x4xf32>,
    %20 = vector.extract_strided_slice %1 {offsets = [2, 0, 0], sizes = [8, 16, 4], strides = [1, 1, 1]} : vector<10x18x4xf32> to vector<8x16x4xf32>
    %21 = vector.shape_cast %20 : vector<8x16x4xf32> to vector<128x4xf32>
    %c0_11 = arith.constant 0 : index
    %c24 = arith.constant 24 : index
    %22 = vector.load %arg6[%c0_11, %c24] : memref<128x36xf32, #tpu.memory_space<vmem>>, vector<128x4xf32>
    tpu.vector_store %arg6[%c0_11, %c24], %21 {strides = array<i32>} : memref<128x36xf32, #tpu.memory_space<vmem>>, vector<128x4xf32>,
    %23 = vector.extract_strided_slice %1 {offsets = [2, 1, 0], sizes = [8, 16, 4], strides = [1, 1, 1]} : vector<10x18x4xf32> to vector<8x16x4xf32>
    %24 = vector.shape_cast %23 : vector<8x16x4xf32> to vector<128x4xf32>
    %c0_12 = arith.constant 0 : index
    %c28 = arith.constant 28 : index
    %25 = vector.load %arg6[%c0_12, %c28] : memref<128x36xf32, #tpu.memory_space<vmem>>, vector<128x4xf32>
    tpu.vector_store %arg6[%c0_12, %c28], %24 {strides = array<i32>} : memref<128x36xf32, #tpu.memory_space<vmem>>, vector<128x4xf32>,
    %26 = vector.extract_strided_slice %1 {offsets = [2, 2, 0], sizes = [8, 16, 4], strides = [1, 1, 1]} : vector<10x18x4xf32> to vector<8x16x4xf32>
    %27 = vector.shape_cast %26 : vector<8x16x4xf32> to vector<128x4xf32>
    %c0_13 = arith.constant 0 : index
    %c32 = arith.constant 32 : index
    %28 = vector.load %arg6[%c0_13, %c32] : memref<128x36xf32, #tpu.memory_space<vmem>>, vector<128x4xf32>
    tpu.vector_store %arg6[%c0_13, %c32], %27 {strides = array<i32>} : memref<128x36xf32, #tpu.memory_space<vmem>>, vector<128x4xf32>,
    %c0_14 = arith.constant 0 : index
    %c0_15 = arith.constant 0 : index
    %29 = vector.load %arg6[%c0_14, %c0_15] : memref<128x36xf32, #tpu.memory_space<vmem>>, vector<128x36xf32>
    %c0_16 = arith.constant 0 : index
    %c0_17 = arith.constant 0 : index
    %30 = vector.load %arg2[%c0_16, %c0_17] : memref<36x128xf32, #tpu.memory_space<vmem>>, vector<36x128xf32>
    %cst = arith.constant dense<0.000000e+00> : vector<128x128xf32>
    %31 = tpu.matmul %29, %30, %cst {dimension_numbers = #tpu.dot_dimension_numbers<[1], [0], [0], [1], [0, 0, 1, 1], [], []>} : vector<128x36xf32>, vector<36x128xf32>, vector<128x128xf32> -> vector<128x128xf32>
    %c0_18 = arith.constant 0 : index
    %c0_19 = arith.constant 0 : index
    %32 = vector.load %arg3[%c0_18, %c0_19] : memref<1x128xf32, #tpu.memory_space<vmem>>, vector<1x128xf32>
    %33 = vector.broadcast %32 : vector<1x128xf32> to vector<128x128xf32>
    %34 = arith.addf %31, %33 : vector<128x128xf32>
    %cst_20 = arith.constant 0.000000e+00 : f32
    %35 = vector.broadcast %cst_20 : f32 to vector<128x128xf32>
    %36 = arith.maximumf %34, %35 : vector<128x128xf32>
    %c0_21 = arith.constant 0 : index
    %c0_22 = arith.constant 0 : index
    %c0_23 = arith.constant 0 : index
    %c0_24 = arith.constant 0 : index
    %37 = vector.load %arg5[%c0_21, %c0_22, %c0_23, %c0_24] : memref<1x1x128x128xf32, #tpu.memory_space<vmem>>, vector<1x1x128x128xf32>
    %38 = vector.shape_cast %37 : vector<1x1x128x128xf32> to vector<128x128xf32>
    %39 = vector.shape_cast %36 : vector<128x128xf32> to vector<1x1x128x128xf32>
    tpu.vector_store %arg5[%c0_21, %c0_22, %c0_23, %c0_24], %39 {strides = array<i32>} : memref<1x1x128x128xf32, #tpu.memory_space<vmem>>, vector<1x1x128x128xf32>,
    return
  }
  func.func @transform_0(%arg0: i32, %arg1: i32) -> (i32, i32) {
    %c0_i32 = arith.constant 0 : i32
    %c0_i32_0 = arith.constant 0 : i32
    %c0_i32_1 = arith.constant 0 : i32
    return %c0_i32, %c0_i32_0 : i32, i32
  }
  func.func @transform_1(%arg0: i32, %arg1: i32) -> (i32, i32) {
    %c0_i32 = arith.constant 0 : i32
    %c0_i32_0 = arith.constant 0 : i32
    %c0_i32_1 = arith.constant 0 : i32
    return %c0_i32, %c0_i32_0 : i32, i32
  }
  func.func @transform_2(%arg0: i32, %arg1: i32) -> (i32, i32, i32, i32, i32) {
    %c0_i32 = arith.constant 0 : i32
    %c0_i32_0 = arith.constant 0 : i32
    %c0_i32_1 = arith.constant 0 : i32
    %c0_i32_2 = arith.constant 0 : i32
    return %arg0, %arg1, %c0_i32, %c0_i32_0, %c0_i32_1 : i32, i32, i32, i32, i32
  }
  func.func @transform_3(%arg0: i32, %arg1: i32) -> (i32, i32, i32, i32) {
    %c0_i32 = arith.constant 0 : i32
    %c0_i32_0 = arith.constant 0 : i32
    %c0_i32_1 = arith.constant 0 : i32
    return %arg0, %arg1, %c0_i32, %c0_i32_0 : i32, i32, i32, i32
  }
}

</mosaic_0001>

<llo_original>
// kernel: basic_conv2d_relu.1
$region0: #{basic_conv2d_relu.1}
  #allocation0 [shape = 'u32[]', space=smem, size = 0x4, offset = 0x4, fixed_abs, tag = 'smem constant byte address 0x4 - core index']
  #allocation1 [shape = 'u32[144,128]{1,0:T(1,128)}', space=vmem, size = 0x12000, scoped, tag = 'internal scratch']
  #allocation2 [shape = 'f32[128,36]{1,0:T(8,128)}', space=vmem, size = 0x10000, scoped, tag = 'scratch operand']
  %s0 = inlined_call_operand.vmem [shape: f32[36,128], index: 0, kind: input, shape index: {}]
  %s1 = inlined_call_operand.vmem [shape: f32[1,128], index: 1, kind: input, shape index: {}]
  %s2 = inlined_call_operand.vmem [shape: f32[2,2,10,18,4], index: 2, kind: input, shape index: {}]
  %s3 = inlined_call_operand.vmem [shape: f32[2,2,128,128], index: 3, kind: output, shape index: {}]
  %s4 = sld [smem:[#allocation0]]
  $region45: #{basic_conv2d_relu.1} parent=0
    _
  %s6 = ssub.s32 1, %s4
  %s7 = scalar_select 0, %s6, %s4
  loop: start=0, step=1, limit=6
  $region2: #{basic_conv2d_relu.1} parent=0 // loop_pre_header
    _
  $region3: #{basic_conv2d_relu.1} parent=0 // loop_header
    %s9 = sphi 0, %s13
    %p10 = scmp.ge.s32.totalorder %s9, 6
    %s16 = sphi 0, %s28
    %s17 = sphi 0, %s24
    %s18 = sphi 0, %s16
    %s19 = sphi 0, %s17
    %s20 = sphi 0, %s18
    %s21 = sphi 0, %s19
    %s29 = sphi 0, %s29
    %s31 = sphi 0, %s29
    %s32 = sphi 0, %s31
    %s46 = sphi 0, %s32
    %s50 = sphi 0, %s50
    %s52 = sphi 0, %s50
    %s53 = sphi 0, %s52
    %s67 = sphi 0, %s53
    %s75 = sphi 0, %s77
    %s78 = sphi 0, %s75
    %s79 = sphi 0, %s78
    %s95 = sphi 0, %s79
    %s103 = sphi 0, %s105
    %s106 = sphi 0, %s103
    %s107 = sphi 0, %s106
    %s123 = sphi 0, %s107
  $region4: #{basic_conv2d_relu.1} parent=0 // loop_header_branch
    %12 = sbr.rel (%p10) target = $region8
  $region5: #{basic_conv2d_relu.1} parent=0 // loop_body
    %s14 = ssub.s32 %s9, 1
    %s15 = ssub.s32 %s9, 2
    %s22 = sadd.s32 1, %s17
    %p23 = scmp.ge.s32.totalorder %s22, 2
    %s24 = scalar_select %p23, 0, %s22
    %s25 = sadd.s32 1, %s16
    %s26 = scalar_select %p23, %s25, %s16
    %p27 = scmp.ge.s32.totalorder %s26, 2
    %s28 = scalar_select %p27, 0, %s26
    %s30 = sadd.s32 %s29, 1
    %p33 = scmp.eq.s32.totalorder %s9, 3
    %p34 = scmp.ne.s32.totalorder %s29, %s31
    %p35 = scmp.eq.s32.totalorder %s9, 0
    %p36 = por %p34, %p35
    %p37 = scmp.ne.s32.totalorder %s29, %s31
    %p38 = scmp.eq.s32.totalorder %s14, 3
    %p39 = por %p37, %p38
    %p40 = scmp.ne.s32.totalorder %s31, %s32
    %p41 = scmp.eq.s32.totalorder %s14, 0
    %p42 = por %p40, %p41
    %p43 = scmp.ne.s32.totalorder %s31, %s32
    %p44 = scmp.eq.s32.totalorder %s15, 3
    %p45 = por %p43, %p44
    %p47 = scmp.ne.s32.totalorder %s32, %s46
    %p48 = scmp.eq.s32.totalorder %s15, 0
    %p49 = por %p47, %p48
    %s51 = sadd.s32 %s50, 1
    %p54 = scmp.eq.s32.totalorder %s9, 3
    %p55 = scmp.ne.s32.totalorder %s50, %s52
    %p56 = scmp.eq.s32.totalorder %s9, 0
    %p57 = por %p55, %p56
    %p58 = scmp.ne.s32.totalorder %s50, %s52
    %p59 = scmp.eq.s32.totalorder %s14, 3
    %p60 = por %p58, %p59
    %p61 = scmp.ne.s32.totalorder %s52, %s53
    %p62 = scmp.eq.s32.totalorder %s14, 0
    %p63 = por %p61, %p62
    %p64 = scmp.ne.s32.totalorder %s52, %s53
    %p65 = scmp.eq.s32.totalorder %s15, 3
    %p66 = por %p64, %p65
    %p68 = scmp.ne.s32.totalorder %s53, %s67
    %p69 = scmp.eq.s32.totalorder %s15, 0
    %p70 = por %p68, %p69
    %s71 = ssub.s32 %s16, %s28
    %s72 = ssub.s32 %s17, %s24
    %s73 = sor.u32 %s71, %s72
    %p74 = scmp.eq.s32.totalorder %s73, 0
    %s76 = sadd.s32 %s75, 1
    %s77 = scalar_select %p74, %s75, %s76
    %p80 = pneg %p74
    %p81 = scmp.eq.s32.totalorder %s9, 3
    %p82 = por %p80, %p81
    %p83 = scmp.ne.s32.totalorder %s75, %s78
    %p84 = scmp.eq.s32.totalorder %s9, 0
    %p85 = por %p83, %p84
    %p86 = scmp.ne.s32.totalorder %s75, %s78
    %p87 = scmp.eq.s32.totalorder %s14, 3
    %p88 = por %p86, %p87
    %p89 = scmp.ne.s32.totalorder %s78, %s79
    %p90 = scmp.eq.s32.totalorder %s14, 0
    %p91 = por %p89, %p90
    %p92 = scmp.ne.s32.totalorder %s78, %s79
    %p93 = scmp.eq.s32.totalorder %s15, 3
    %p94 = por %p92, %p93
    %p96 = scmp.ne.s32.totalorder %s79, %s95
    %p97 = scmp.eq.s32.totalorder %s15, 0
    %p98 = por %p96, %p97
    %s99 = ssub.s32 %s16, %s28
    %s100 = ssub.s32 %s17, %s24
    %s101 = sor.u32 %s99, %s100
    %p102 = scmp.eq.s32.totalorder %s101, 0
    %s104 = sadd.s32 %s103, 1
    %s105 = scalar_select %p102, %s103, %s104
    %p108 = pneg %p102
    %p109 = scmp.eq.s32.totalorder %s9, 3
    %p110 = por %p108, %p109
    %p111 = scmp.ne.s32.totalorder %s103, %s106
    %p112 = scmp.eq.s32.totalorder %s9, 0
    %p113 = por %p111, %p112
    %p114 = scmp.ne.s32.totalorder %s103, %s106
    %p115 = scmp.eq.s32.totalorder %s14, 3
    %p116 = por %p114, %p115
    %p117 = scmp.ne.s32.totalorder %s106, %s107
    %p118 = scmp.eq.s32.totalorder %s14, 0
    %p119 = por %p117, %p118
    %p120 = scmp.ne.s32.totalorder %s106, %s107
    %p121 = scmp.eq.s32.totalorder %s15, 3
    %p122 = por %p120, %p121
    %p124 = scmp.ne.s32.totalorder %s107, %s123
    %p125 = scmp.eq.s32.totalorder %s15, 0
    %p126 = por %p124, %p125
    %p127 = scmp.le.s32.totalorder 1, %s9
    %p128 = scmp.lt.s32.totalorder %s9, 5
    %p129 = pnand %p127, %p128
    %p130 = pneg %p129
    // Predicated region
    $region9: #{basic_conv2d_relu.1} parent=5 // pred_check
      _
    $region10: #{basic_conv2d_relu.1} parent=5 // pred_check_branch
      %132 = sbr.rel (%p129) target = $region12
    $region11: #{basic_conv2d_relu.1} parent=5 // pred_region
      %s133 = ssub.s32 %s9, 1
      // Predicated region
      $region13: #{basic_conv2d_relu.1} parent=11 // pred_check
        %p134 = pneg %p42
      $region14: #{basic_conv2d_relu.1} parent=11 // pred_check_branch
        %136 = sbr.rel (%p134) target = $region16
      $region15: #{basic_conv2d_relu.1} parent=11 // pred_region
        _
      $region16: #{basic_conv2d_relu.1} parent=11 // pred_fallthru
        _
      // Predicated region
      $region17: #{basic_conv2d_relu.1} parent=11 // pred_check
        %p137 = pneg %p63
      $region18: #{basic_conv2d_relu.1} parent=11 // pred_check_branch
        %139 = sbr.rel (%p137) target = $region20
      $region19: #{basic_conv2d_relu.1} parent=11 // pred_region
        _
      $region20: #{basic_conv2d_relu.1} parent=11 // pred_fallthru
        _
    $region12: #{basic_conv2d_relu.1} parent=5 // pred_fallthru
      _
    %p140 = scmp.lt.s32.totalorder %s9, 4
    // Predicated region
    $region21: #{basic_conv2d_relu.1} parent=5 // pred_check
      %p141 = pneg %p140
    $region22: #{basic_conv2d_relu.1} parent=5 // pred_check_branch
      %143 = sbr.rel (%p141) target = $region24
    $region23: #{basic_conv2d_relu.1} parent=5 // pred_region
      // Predicated region
      $region25: #{basic_conv2d_relu.1} parent=23 // pred_check
        %p144 = pneg %p85
      $region26: #{basic_conv2d_relu.1} parent=23 // pred_check_branch
        %146 = sbr.rel (%p144) target = $region28
      $region27: #{basic_conv2d_relu.1} parent=23 // pred_region
        %p147 = scmp.lt.s32.totalorder %s16, 1
        %s148 = scalar_select %p147, %s16, 1
        %p149 = scmp.lt.s32.totalorder %s17, 1
        %s150 = scalar_select %p149, %s17, 1
        %s151 = smul.addr %s150, 30
        %s152 = smul.addr %s148, 60
        %s153 = sadd.s32 %s151, %s152
        %s154 = smul.addr %s153, 8
        %s155 = scalar_lea.vmem %s2, %s154
      $region28: #{basic_conv2d_relu.1} parent=23 // pred_fallthru
        _
    $region24: #{basic_conv2d_relu.1} parent=5 // pred_fallthru
      _
    %p156 = scmp.le.s32.totalorder 1, %s9
    %p157 = scmp.lt.s32.totalorder %s9, 5
    %p158 = pnand %p156, %p157
    %p159 = pneg %p158
    // Predicated region
    $region29: #{basic_conv2d_relu.1} parent=5 // pred_check
      _
    $region30: #{basic_conv2d_relu.1} parent=5 // pred_check_branch
      %161 = sbr.rel (%p158) target = $region32
    $region31: #{basic_conv2d_relu.1} parent=5 // pred_region
      %s162 = ssub.s32 %s9, 1
      %p163 = pneg %p42
      %p164 = pneg %p39
      %p165 = pneg %p63
      %p166 = pneg %p60
      %p167 = scmp.lt.s32.totalorder %s18, 1
      %s168 = scalar_select %p167, %s18, 1
      %p169 = scmp.lt.s32.totalorder %s19, 1
      %s170 = scalar_select %p169, %s19, 1
      %s171 = smul.addr %s170, 30
      %s172 = smul.addr %s168, 60
      %s173 = sadd.s32 %s171, %s172
      %s174 = smul.addr %s173, 8
      %s175 = scalar_lea.vmem %s2, %s174
      %p176 = pneg %p91
      %p177 = pneg %p88
      %p178 = pneg %p119
      %p179 = pneg %p116
      %p180 = scmp.lt.s32.totalorder %s18, 1
      %s181 = scalar_select %p180, %s18, 1
      %p182 = scmp.lt.s32.totalorder %s19, 1
      %s183 = scalar_select %p182, %s19, 1
      %s184 = smul.addr %s183, 16
      %s185 = smul.addr %s181, 32
      %s186 = sadd.s32 %s184, %s185
      %s187 = smul.addr %s186, 8
      %s188 = scalar_lea.vmem %s3, %s187
      %p189 = scmp.lt.s32.totalorder %s18, 1
      %s190 = scalar_select %p189, %s18, 1
      %p191 = scmp.lt.s32.totalorder %s19, 1
      %s192 = scalar_select %p191, %s19, 1
      %s193 = smul.addr %s192, 30
      %s194 = smul.addr %s190, 60
      %s195 = sadd.s32 %s193, %s194
      %s196 = smul.addr %s195, 8
      %s197 = scalar_lea.vmem %s2, %s196
      %p198 = scmp.lt.s32.totalorder %s18, 1
      %s199 = scalar_select %p198, %s18, 1
      %p200 = scmp.lt.s32.totalorder %s19, 1
      %s201 = scalar_select %p200, %s19, 1
      %s202 = smul.addr %s201, 16
      %s203 = smul.addr %s199, 32
      %s204 = sadd.s32 %s202, %s203
      %s205 = smul.addr %s204, 8
      %s206 = scalar_lea.vmem %s3, %s205
      %v207 = vld [vmem:[%s197] sm:$0xff]
      %v208 = vld [vmem:[%s197 + $0x8] sm:$0xff]
      %v209 = vld [vmem:[%s197 + $0x10] sm:$0x3]
      %v210 = vld [vmem:[%s197 + $0x18] sm:$0xff]
      %v211 = vld [vmem:[%s197 + $0x20] sm:$0xff]
      %v212 = vld [vmem:[%s197 + $0x28] sm:$0x3]
      %v213 = vld [vmem:[%s197 + $0x30] sm:$0xff]
      %v214 = vld [vmem:[%s197 + $0x38] sm:$0xff]
      %v215 = vld [vmem:[%s197 + $0x40] sm:$0x3]
      %v216 = vld [vmem:[%s197 + $0x48] sm:$0xff]
      %v217 = vld [vmem:[%s197 + $0x50] sm:$0xff]
      %v218 = vld [vmem:[%s197 + $0x58] sm:$0x3]
      %v219 = vld [vmem:[%s197 + $0x60] sm:$0xff]
      %v220 = vld [vmem:[%s197 + $0x68] sm:$0xff]
      %v221 = vld [vmem:[%s197 + $0x70] sm:$0x3]
      %v222 = vld [vmem:[%s197 + $0x78] sm:$0xff]
      %v223 = vld [vmem:[%s197 + $0x80] sm:$0xff]
      %v224 = vld [vmem:[%s197 + $0x88] sm:$0x3]
      %v225 = vld [vmem:[%s197 + $0x90] sm:$0xff]
      %v226 = vld [vmem:[%s197 + $0x98] sm:$0xff]
      %v227 = vld [vmem:[%s197 + $0xa0] sm:$0x3]
      %v228 = vld [vmem:[%s197 + $0xa8] sm:$0xff]
      %v229 = vld [vmem:[%s197 + $0xb0] sm:$0xff]
      %v230 = vld [vmem:[%s197 + $0xb8] sm:$0x3]
      %v231 = vld [vmem:[%s197 + $0xc0] sm:$0xff]
      %v232 = vld [vmem:[%s197 + $0xc8] sm:$0xff]
      %v233 = vld [vmem:[%s197 + $0xd0] sm:$0x3]
      %v234 = vld [vmem:[%s197 + $0xd8] sm:$0xff]
      %v235 = vld [vmem:[%s197 + $0xe0] sm:$0xff]
      %v236 = vld [vmem:[%s197 + $0xe8] sm:$0x3]
      %vm237 = vcmask 31744
      %238 = vst.msk [vmem:[#allocation2] sm:$0xff] %vm237, %v207
      %239 = vst.msk [vmem:[#allocation2 + $0x8] sm:$0xff] %vm237, %v208
      %240 = vst.msk [vmem:[#allocation2 + $0x10] sm:$0xff] %vm237, %v210
      %241 = vst.msk [vmem:[#allocation2 + $0x18] sm:$0xff] %vm237, %v211
      %242 = vst.msk [vmem:[#allocation2 + $0x20] sm:$0xff] %vm237, %v213
      %243 = vst.msk [vmem:[#allocation2 + $0x28] sm:$0xff] %vm237, %v214
      %244 = vst.msk [vmem:[#allocation2 + $0x30] sm:$0xff] %vm237, %v216
      %245 = vst.msk [vmem:[#allocation2 + $0x38] sm:$0xff] %vm237, %v217
      %246 = vst.msk [vmem:[#allocation2 + $0x40] sm:$0xff] %vm237, %v219
      %247 = vst.msk [vmem:[#allocation2 + $0x48] sm:$0xff] %vm237, %v220
      %248 = vst.msk [vmem:[#allocation2 + $0x50] sm:$0xff] %vm237, %v222
      %249 = vst.msk [vmem:[#allocation2 + $0x58] sm:$0xff] %vm237, %v223
      %250 = vst.msk [vmem:[#allocation2 + $0x60] sm:$0xff] %vm237, %v225
      %251 = vst.msk [vmem:[#allocation2 + $0x68] sm:$0xff] %vm237, %v226
      %252 = vst.msk [vmem:[#allocation2 + $0x70] sm:$0xff] %vm237, %v228
      %253 = vst.msk [vmem:[#allocation2 + $0x78] sm:$0xff] %vm237, %v229
      %vm278 = vcmask 1046528
      %v279 = vrot.slane %v207, 1
      %v280 = vrot.slane %v208, 1
      %v281 = vsel %vm278, %v279, %v280
      %v282 = vrot.slane %v209, 1
      %v283 = vsel %vm278, %v280, %v282
      %v284 = vrot.slane %v210, 1
      %v285 = vrot.slane %v211, 1
      %v286 = vsel %vm278, %v284, %v285
      %v287 = vrot.slane %v212, 1
      %v288 = vsel %vm278, %v285, %v287
      %v289 = vrot.slane %v213, 1
      %v290 = vrot.slane %v214, 1
      %v291 = vsel %vm278, %v289, %v290
      %v292 = vrot.slane %v215, 1
      %v293 = vsel %vm278, %v290, %v292
      %v294 = vrot.slane %v216, 1
      %v295 = vrot.slane %v217, 1
      %v296 = vsel %vm278, %v294, %v295
      %v297 = vrot.slane %v218, 1
      %v298 = vsel %vm278, %v295, %v297
      %v299 = vrot.slane %v219, 1
      %v300 = vrot.slane %v220, 1
      %v301 = vsel %vm278, %v299, %v300
      %v302 = vrot.slane %v221, 1
      %v303 = vsel %vm278, %v300, %v302
      %v304 = vrot.slane %v222, 1
      %v305 = vrot.slane %v223, 1
      %v306 = vsel %vm278, %v304, %v305
      %v307 = vrot.slane %v224, 1
      %v308 = vsel %vm278, %v305, %v307
      %v309 = vrot.slane %v225, 1
      %v310 = vrot.slane %v226, 1
      %v311 = vsel %vm278, %v309, %v310
      %v312 = vrot.slane %v227, 1
      %v313 = vsel %vm278, %v310, %v312
      %v314 = vrot.slane %v228, 1
      %v315 = vrot.slane %v229, 1
      %v316 = vsel %vm278, %v314, %v315
      %v317 = vrot.slane %v230, 1
      %v318 = vsel %vm278, %v315, %v317
      %319 = vrot.lane.b32.xlu0 %v281, 4
      %v320 = vpop.permute.xlu0 %319
      %321 = vrot.lane.b32.xlu0 %v283, 4
      %v322 = vpop.permute.xlu0 %321
      %323 = vrot.lane.b32.xlu0 %v286, 4
      %v324 = vpop.permute.xlu0 %323
      %325 = vrot.lane.b32.xlu0 %v288, 4
      %v326 = vpop.permute.xlu0 %325
      %327 = vrot.lane.b32.xlu0 %v291, 4
      %v328 = vpop.permute.xlu0 %327
      %329 = vrot.lane.b32.xlu0 %v293, 4
      %v330 = vpop.permute.xlu0 %329
      %331 = vrot.lane.b32.xlu0 %v296, 4
      %v332 = vpop.permute.xlu0 %331
      %333 = vrot.lane.b32.xlu0 %v298, 4
      %v334 = vpop.permute.xlu0 %333
      %335 = vrot.lane.b32.xlu0 %v301, 4
      %v336 = vpop.permute.xlu0 %335
      %337 = vrot.lane.b32.xlu0 %v303, 4
      %v338 = vpop.permute.xlu0 %337
      %339 = vrot.lane.b32.xlu0 %v306, 4
      %v340 = vpop.permute.xlu0 %339
      %341 = vrot.lane.b32.xlu0 %v308, 4
      %v342 = vpop.permute.xlu0 %341
      %343 = vrot.lane.b32.xlu0 %v311, 4
      %v344 = vpop.permute.xlu0 %343
      %345 = vrot.lane.b32.xlu0 %v313, 4
      %v346 = vpop.permute.xlu0 %345
      %347 = vrot.lane.b32.xlu0 %v316, 4
      %v348 = vpop.permute.xlu0 %347
      %349 = vrot.lane.b32.xlu0 %v318, 4
      %v350 = vpop.permute.xlu0 %349
      %vm367 = vcmask 64544
      %368 = vst.msk [vmem:[#allocation2] sm:$0xff] %vm367, %v320
      %369 = vst.msk [vmem:[#allocation2 + $0x8] sm:$0xff] %vm367, %v322
      %370 = vst.msk [vmem:[#allocation2 + $0x10] sm:$0xff] %vm367, %v324
      %371 = vst.msk [vmem:[#allocation2 + $0x18] sm:$0xff] %vm367, %v326
      %372 = vst.msk [vmem:[#allocation2 + $0x20] sm:$0xff] %vm367, %v328
      %373 = vst.msk [vmem:[#allocation2 + $0x28] sm:$0xff] %vm367, %v330
      %374 = vst.msk [vmem:[#allocation2 + $0x30] sm:$0xff] %vm367, %v332
      %375 = vst.msk [vmem:[#allocation2 + $0x38] sm:$0xff] %vm367, %v334
      %376 = vst.msk [vmem:[#allocation2 + $0x40] sm:$0xff] %vm367, %v336
      %377 = vst.msk [vmem:[#allocation2 + $0x48] sm:$0xff] %vm367, %v338
      %378 = vst.msk [vmem:[#allocation2 + $0x50] sm:$0xff] %vm367, %v340
      %379 = vst.msk [vmem:[#allocation2 + $0x58] sm:$0xff] %vm367, %v342
      %380 = vst.msk [vmem:[#allocation2 + $0x60] sm:$0xff] %vm367, %v344
      %381 = vst.msk [vmem:[#allocation2 + $0x68] sm:$0xff] %vm367, %v346
      %382 = vst.msk [vmem:[#allocation2 + $0x70] sm:$0xff] %vm367, %v348
      %383 = vst.msk [vmem:[#allocation2 + $0x78] sm:$0xff] %vm367, %v350
      %vm384 = vcmask 1045504
      %v385 = vrot.slane %v207, 2
      %v386 = vrot.slane %v208, 2
      %v387 = vsel %vm384, %v385, %v386
      %v388 = vrot.slane %v209, 2
      %v389 = vsel %vm384, %v386, %v388
      %v390 = vrot.slane %v210, 2
      %v391 = vrot.slane %v211, 2
      %v392 = vsel %vm384, %v390, %v391
      %v393 = vrot.slane %v212, 2
      %v394 = vsel %vm384, %v391, %v393
      %v395 = vrot.slane %v213, 2
      %v396 = vrot.slane %v214, 2
      %v397 = vsel %vm384, %v395, %v396
      %v398 = vrot.slane %v215, 2
      %v399 = vsel %vm384, %v396, %v398
      %v400 = vrot.slane %v216, 2
      %v401 = vrot.slane %v217, 2
      %v402 = vsel %vm384, %v400, %v401
      %v403 = vrot.slane %v218, 2
      %v404 = vsel %vm384, %v401, %v403
      %v405 = vrot.slane %v219, 2
      %v406 = vrot.slane %v220, 2
      %v407 = vsel %vm384, %v405, %v406
      %v408 = vrot.slane %v221, 2
      %v409 = vsel %vm384, %v406, %v408
      %v410 = vrot.slane %v222, 2
      %v411 = vrot.slane %v223, 2
      %v412 = vsel %vm384, %v410, %v411
      %v413 = vrot.slane %v224, 2
      %v414 = vsel %vm384, %v411, %v413
      %v415 = vrot.slane %v225, 2
      %v416 = vrot.slane %v226, 2
      %v417 = vsel %vm384, %v415, %v416
      %v418 = vrot.slane %v227, 2
      %v419 = vsel %vm384, %v416, %v418
      %v420 = vrot.slane %v228, 2
      %v421 = vrot.slane %v229, 2
      %v422 = vsel %vm384, %v420, %v421
      %v423 = vrot.slane %v230, 2
      %v424 = vsel %vm384, %v421, %v423
      %425 = vrot.lane.b32.xlu0 %v387, 8
      %v426 = vpop.permute.xlu0 %425
      %427 = vrot.lane.b32.xlu0 %v389, 8
      %v428 = vpop.permute.xlu0 %427
      %429 = vrot.lane.b32.xlu0 %v392, 8
      %v430 = vpop.permute.xlu0 %429
      %431 = vrot.lane.b32.xlu0 %v394, 8
      %v432 = vpop.permute.xlu0 %431
      %433 = vrot.lane.b32.xlu0 %v397, 8
      %v434 = vpop.permute.xlu0 %433
      %435 = vrot.lane.b32.xlu0 %v399, 8
      %v436 = vpop.permute.xlu0 %435
      %437 = vrot.lane.b32.xlu0 %v402, 8
      %v438 = vpop.permute.xlu0 %437
      %439 = vrot.lane.b32.xlu0 %v404, 8
      %v440 = vpop.permute.xlu0 %439
      %441 = vrot.lane.b32.xlu0 %v407, 8
      %v442 = vpop.permute.xlu0 %441
      %443 = vrot.lane.b32.xlu0 %v409, 8
      %v444 = vpop.permute.xlu0 %443
      %445 = vrot.lane.b32.xlu0 %v412, 8
      %v446 = vpop.permute.xlu0 %445
      %447 = vrot.lane.b32.xlu0 %v414, 8
      %v448 = vpop.permute.xlu0 %447
      %449 = vrot.lane.b32.xlu0 %v417, 8
      %v450 = vpop.permute.xlu0 %449
      %451 = vrot.lane.b32.xlu0 %v419, 8
      %v452 = vpop.permute.xlu0 %451
      %453 = vrot.lane.b32.xlu0 %v422, 8
      %v454 = vpop.permute.xlu0 %453
      %455 = vrot.lane.b32.xlu0 %v424, 8
      %v456 = vpop.permute.xlu0 %455
      %vm473 = vcmask 97344
      %474 = vst.msk [vmem:[#allocation2] sm:$0xff] %vm473, %v426
      %475 = vst.msk [vmem:[#allocation2 + $0x8] sm:$0xff] %vm473, %v428
      %476 = vst.msk [vmem:[#allocation2 + $0x10] sm:$0xff] %vm473, %v430
      %477 = vst.msk [vmem:[#allocation2 + $0x18] sm:$0xff] %vm473, %v432
      %478 = vst.msk [vmem:[#allocation2 + $0x20] sm:$0xff] %vm473, %v434
      %479 = vst.msk [vmem:[#allocation2 + $0x28] sm:$0xff] %vm473, %v436
      %480 = vst.msk [vmem:[#allocation2 + $0x30] sm:$0xff] %vm473, %v438
      %481 = vst.msk [vmem:[#allocation2 + $0x38] sm:$0xff] %vm473, %v440
      %482 = vst.msk [vmem:[#allocation2 + $0x40] sm:$0xff] %vm473, %v442
      %483 = vst.msk [vmem:[#allocation2 + $0x48] sm:$0xff] %vm473, %v444
      %484 = vst.msk [vmem:[#allocation2 + $0x50] sm:$0xff] %vm473, %v446
      %485 = vst.msk [vmem:[#allocation2 + $0x58] sm:$0xff] %vm473, %v448
      %486 = vst.msk [vmem:[#allocation2 + $0x60] sm:$0xff] %vm473, %v450
      %487 = vst.msk [vmem:[#allocation2 + $0x68] sm:$0xff] %vm473, %v452
      %488 = vst.msk [vmem:[#allocation2 + $0x70] sm:$0xff] %vm473, %v454
      %489 = vst.msk [vmem:[#allocation2 + $0x78] sm:$0xff] %vm473, %v456
      %492 = vrot.lane.b32.xlu0 %v210, 12
      %v493 = vpop.permute.xlu0 %492
      %494 = vrot.lane.b32.xlu0 %v211, 12
      %v495 = vpop.permute.xlu0 %494
      %496 = vrot.lane.b32.xlu0 %v213, 12
      %v497 = vpop.permute.xlu0 %496
      %498 = vrot.lane.b32.xlu0 %v214, 12
      %v499 = vpop.permute.xlu0 %498
      %500 = vrot.lane.b32.xlu0 %v216, 12
      %v501 = vpop.permute.xlu0 %500
      %502 = vrot.lane.b32.xlu0 %v217, 12
      %v503 = vpop.permute.xlu0 %502
      %504 = vrot.lane.b32.xlu0 %v219, 12
      %v505 = vpop.permute.xlu0 %504
      %506 = vrot.lane.b32.xlu0 %v220, 12
      %v507 = vpop.permute.xlu0 %506
      %508 = vrot.lane.b32.xlu0 %v222, 12
      %v509 = vpop.permute.xlu0 %508
      %510 = vrot.lane.b32.xlu0 %v223, 12
      %v511 = vpop.permute.xlu0 %510
      %512 = vrot.lane.b32.xlu0 %v225, 12
      %v513 = vpop.permute.xlu0 %512
      %514 = vrot.lane.b32.xlu0 %v226, 12
      %v515 = vpop.permute.xlu0 %514
      %516 = vrot.lane.b32.xlu0 %v228, 12
      %v517 = vpop.permute.xlu0 %516
      %518 = vrot.lane.b32.xlu0 %v229, 12
      %v519 = vpop.permute.xlu0 %518
      %520 = vrot.lane.b32.xlu0 %v231, 12
      %v521 = vpop.permute.xlu0 %520
      %522 = vrot.lane.b32.xlu0 %v232, 12
      %v523 = vpop.permute.xlu0 %522
      %vm540 = vcmask 130144
      %541 = vst.msk [vmem:[#allocation2] sm:$0xff] %vm540, %v493
      %542 = vst.msk [vmem:[#allocation2 + $0x8] sm:$0xff] %vm540, %v495
      %543 = vst.msk [vmem:[#allocation2 + $0x10] sm:$0xff] %vm540, %v497
      %544 = vst.msk [vmem:[#allocation2 + $0x18] sm:$0xff] %vm540, %v499
      %545 = vst.msk [vmem:[#allocation2 + $0x20] sm:$0xff] %vm540, %v501
      %546 = vst.msk [vmem:[#allocation2 + $0x28] sm:$0xff] %vm540, %v503
      %547 = vst.msk [vmem:[#allocation2 + $0x30] sm:$0xff] %vm540, %v505
      %548 = vst.msk [vmem:[#allocation2 + $0x38] sm:$0xff] %vm540, %v507
      %549 = vst.msk [vmem:[#allocation2 + $0x40] sm:$0xff] %vm540, %v509
      %550 = vst.msk [vmem:[#allocation2 + $0x48] sm:$0xff] %vm540, %v511
      %551 = vst.msk [vmem:[#allocation2 + $0x50] sm:$0xff] %vm540, %v513
      %552 = vst.msk [vmem:[#allocation2 + $0x58] sm:$0xff] %vm540, %v515
      %553 = vst.msk [vmem:[#allocation2 + $0x60] sm:$0xff] %vm540, %v517
      %554 = vst.msk [vmem:[#allocation2 + $0x68] sm:$0xff] %vm540, %v519
      %555 = vst.msk [vmem:[#allocation2 + $0x70] sm:$0xff] %vm540, %v521
      %556 = vst.msk [vmem:[#allocation2 + $0x78] sm:$0xff] %vm540, %v523
      %v558 = vrot.slane %v231, 1
      %v559 = vrot.slane %v232, 1
      %v560 = vsel %vm278, %v558, %v559
      %v561 = vrot.slane %v233, 1
      %v562 = vsel %vm278, %v559, %v561
      %563 = vrot.lane.b32.xlu0 %v286, 16
      %v564 = vpop.permute.xlu0 %563
      %565 = vrot.lane.b32.xlu0 %v288, 16
      %v566 = vpop.permute.xlu0 %565
      %567 = vrot.lane.b32.xlu0 %v291, 16
      %v568 = vpop.permute.xlu0 %567
      %569 = vrot.lane.b32.xlu0 %v293, 16
      %v570 = vpop.permute.xlu0 %569
      %571 = vrot.lane.b32.xlu0 %v296, 16
      %v572 = vpop.permute.xlu0 %571
      %573 = vrot.lane.b32.xlu0 %v298, 16
      %v574 = vpop.permute.xlu0 %573
      %575 = vrot.lane.b32.xlu0 %v301, 16
      %v576 = vpop.permute.xlu0 %575
      %577 = vrot.lane.b32.xlu0 %v303, 16
      %v578 = vpop.permute.xlu0 %577
      %579 = vrot.lane.b32.xlu0 %v306, 16
      %v580 = vpop.permute.xlu0 %579
      %581 = vrot.lane.b32.xlu0 %v308, 16
      %v582 = vpop.permute.xlu0 %581
      %583 = vrot.lane.b32.xlu0 %v311, 16
      %v584 = vpop.permute.xlu0 %583
      %585 = vrot.lane.b32.xlu0 %v313, 16
      %v586 = vpop.permute.xlu0 %585
      %587 = vrot.lane.b32.xlu0 %v316, 16
      %v588 = vpop.permute.xlu0 %587
      %589 = vrot.lane.b32.xlu0 %v318, 16
      %v590 = vpop.permute.xlu0 %589
      %591 = vrot.lane.b32.xlu0 %v560, 16
      %v592 = vpop.permute.xlu0 %591
      %593 = vrot.lane.b32.xlu0 %v562, 16
      %v594 = vpop.permute.xlu0 %593
      %vm611 = vcmask 162944
      %612 = vst.msk [vmem:[#allocation2] sm:$0xff] %vm611, %v564
      %613 = vst.msk [vmem:[#allocation2 + $0x8] sm:$0xff] %vm611, %v566
      %614 = vst.msk [vmem:[#allocation2 + $0x10] sm:$0xff] %vm611, %v568
      %615 = vst.msk [vmem:[#allocation2 + $0x18] sm:$0xff] %vm611, %v570
      %616 = vst.msk [vmem:[#allocation2 + $0x20] sm:$0xff] %vm611, %v572
      %617 = vst.msk [vmem:[#allocation2 + $0x28] sm:$0xff] %vm611, %v574
      %618 = vst.msk [vmem:[#allocation2 + $0x30] sm:$0xff] %vm611, %v576
      %619 = vst.msk [vmem:[#allocation2 + $0x38] sm:$0xff] %vm611, %v578
      %620 = vst.msk [vmem:[#allocation2 + $0x40] sm:$0xff] %vm611, %v580
      %621 = vst.msk [vmem:[#allocation2 + $0x48] sm:$0xff] %vm611, %v582
      %622 = vst.msk [vmem:[#allocation2 + $0x50] sm:$0xff] %vm611, %v584
      %623 = vst.msk [vmem:[#allocation2 + $0x58] sm:$0xff] %vm611, %v586
      %624 = vst.msk [vmem:[#allocation2 + $0x60] sm:$0xff] %vm611, %v588
      %625 = vst.msk [vmem:[#allocation2 + $0x68] sm:$0xff] %vm611, %v590
      %626 = vst.msk [vmem:[#allocation2 + $0x70] sm:$0xff] %vm611, %v592
      %627 = vst.msk [vmem:[#allocation2 + $0x78] sm:$0xff] %vm611, %v594
      %v628 = vrot.slane %v231, 2
      %v629 = vrot.slane %v232, 2
      %v630 = vsel %vm384, %v628, %v629
      %v631 = vrot.slane %v233, 2
      %v632 = vsel %vm384, %v629, %v631
      %633 = vrot.lane.b32.xlu0 %v392, 20
      %v634 = vpop.permute.xlu0 %633
      %635 = vrot.lane.b32.xlu0 %v394, 20
      %v636 = vpop.permute.xlu0 %635
      %637 = vrot.lane.b32.xlu0 %v397, 20
      %v638 = vpop.permute.xlu0 %637
      %639 = vrot.lane.b32.xlu0 %v399, 20
      %v640 = vpop.permute.xlu0 %639
      %641 = vrot.lane.b32.xlu0 %v402, 20
      %v642 = vpop.permute.xlu0 %641
      %643 = vrot.lane.b32.xlu0 %v404, 20
      %v644 = vpop.permute.xlu0 %643
      %645 = vrot.lane.b32.xlu0 %v407, 20
      %v646 = vpop.permute.xlu0 %645
      %647 = vrot.lane.b32.xlu0 %v409, 20
      %v648 = vpop.permute.xlu0 %647
      %649 = vrot.lane.b32.xlu0 %v412, 20
      %v650 = vpop.permute.xlu0 %649
      %651 = vrot.lane.b32.xlu0 %v414, 20
      %v652 = vpop.permute.xlu0 %651
      %653 = vrot.lane.b32.xlu0 %v417, 20
      %v654 = vpop.permute.xlu0 %653
      %655 = vrot.lane.b32.xlu0 %v419, 20
      %v656 = vpop.permute.xlu0 %655
      %657 = vrot.lane.b32.xlu0 %v422, 20
      %v658 = vpop.permute.xlu0 %657
      %659 = vrot.lane.b32.xlu0 %v424, 20
      %v660 = vpop.permute.xlu0 %659
      %661 = vrot.lane.b32.xlu0 %v630, 20
      %v662 = vpop.permute.xlu0 %661
      %663 = vrot.lane.b32.xlu0 %v632, 20
      %v664 = vpop.permute.xlu0 %663
      %vm681 = vcmask 195744
      %682 = vst.msk [vmem:[#allocation2] sm:$0xff] %vm681, %v634
      %683 = vst.msk [vmem:[#allocation2 + $0x8] sm:$0xff] %vm681, %v636
      %684 = vst.msk [vmem:[#allocation2 + $0x10] sm:$0xff] %vm681, %v638
      %685 = vst.msk [vmem:[#allocation2 + $0x18] sm:$0xff] %vm681, %v640
      %686 = vst.msk [vmem:[#allocation2 + $0x20] sm:$0xff] %vm681, %v642
      %687 = vst.msk [vmem:[#allocation2 + $0x28] sm:$0xff] %vm681, %v644
      %688 = vst.msk [vmem:[#allocation2 + $0x30] sm:$0xff] %vm681, %v646
      %689 = vst.msk [vmem:[#allocation2 + $0x38] sm:$0xff] %vm681, %v648
      %690 = vst.msk [vmem:[#allocation2 + $0x40] sm:$0xff] %vm681, %v650
      %691 = vst.msk [vmem:[#allocation2 + $0x48] sm:$0xff] %vm681, %v652
      %692 = vst.msk [vmem:[#allocation2 + $0x50] sm:$0xff] %vm681, %v654
      %693 = vst.msk [vmem:[#allocation2 + $0x58] sm:$0xff] %vm681, %v656
      %694 = vst.msk [vmem:[#allocation2 + $0x60] sm:$0xff] %vm681, %v658
      %695 = vst.msk [vmem:[#allocation2 + $0x68] sm:$0xff] %vm681, %v660
      %696 = vst.msk [vmem:[#allocation2 + $0x70] sm:$0xff] %vm681, %v662
      %697 = vst.msk [vmem:[#allocation2 + $0x78] sm:$0xff] %vm681, %v664
      %700 = vrot.lane.b32.xlu0 %v213, 24
      %v701 = vpop.permute.xlu0 %700
      %702 = vrot.lane.b32.xlu0 %v214, 24
      %v703 = vpop.permute.xlu0 %702
      %704 = vrot.lane.b32.xlu0 %v216, 24
      %v705 = vpop.permute.xlu0 %704
      %706 = vrot.lane.b32.xlu0 %v217, 24
      %v707 = vpop.permute.xlu0 %706
      %708 = vrot.lane.b32.xlu0 %v219, 24
      %v709 = vpop.permute.xlu0 %708
      %710 = vrot.lane.b32.xlu0 %v220, 24
      %v711 = vpop.permute.xlu0 %710
      %712 = vrot.lane.b32.xlu0 %v222, 24
      %v713 = vpop.permute.xlu0 %712
      %714 = vrot.lane.b32.xlu0 %v223, 24
      %v715 = vpop.permute.xlu0 %714
      %716 = vrot.lane.b32.xlu0 %v225, 24
      %v717 = vpop.permute.xlu0 %716
      %718 = vrot.lane.b32.xlu0 %v226, 24
      %v719 = vpop.permute.xlu0 %718
      %720 = vrot.lane.b32.xlu0 %v228, 24
      %v721 = vpop.permute.xlu0 %720
      %722 = vrot.lane.b32.xlu0 %v229, 24
      %v723 = vpop.permute.xlu0 %722
      %724 = vrot.lane.b32.xlu0 %v231, 24
      %v725 = vpop.permute.xlu0 %724
      %726 = vrot.lane.b32.xlu0 %v232, 24
      %v727 = vpop.permute.xlu0 %726
      %728 = vrot.lane.b32.xlu0 %v234, 24
      %v729 = vpop.permute.xlu0 %728
      %730 = vrot.lane.b32.xlu0 %v235, 24
      %v731 = vpop.permute.xlu0 %730
      %vm748 = vcmask 228544
      %749 = vst.msk [vmem:[#allocation2] sm:$0xff] %vm748, %v701
      %750 = vst.msk [vmem:[#allocation2 + $0x8] sm:$0xff] %vm748, %v703
      %751 = vst.msk [vmem:[#allocation2 + $0x10] sm:$0xff] %vm748, %v705
      %752 = vst.msk [vmem:[#allocation2 + $0x18] sm:$0xff] %vm748, %v707
      %753 = vst.msk [vmem:[#allocation2 + $0x20] sm:$0xff] %vm748, %v709
      %754 = vst.msk [vmem:[#allocation2 + $0x28] sm:$0xff] %vm748, %v711
      %755 = vst.msk [vmem:[#allocation2 + $0x30] sm:$0xff] %vm748, %v713
      %756 = vst.msk [vmem:[#allocation2 + $0x38] sm:$0xff] %vm748, %v715
      %757 = vst.msk [vmem:[#allocation2 + $0x40] sm:$0xff] %vm748, %v717
      %758 = vst.msk [vmem:[#allocation2 + $0x48] sm:$0xff] %vm748, %v719
      %759 = vst.msk [vmem:[#allocation2 + $0x50] sm:$0xff] %vm748, %v721
      %760 = vst.msk [vmem:[#allocation2 + $0x58] sm:$0xff] %vm748, %v723
      %761 = vst.msk [vmem:[#allocation2 + $0x60] sm:$0xff] %vm748, %v725
      %762 = vst.msk [vmem:[#allocation2 + $0x68] sm:$0xff] %vm748, %v727
      %763 = vst.msk [vmem:[#allocation2 + $0x70] sm:$0xff] %vm748, %v729
      %764 = vst.msk [vmem:[#allocation2 + $0x78] sm:$0xff] %vm748, %v731
      %v766 = vrot.slane %v234, 1
      %v767 = vrot.slane %v235, 1
      %v768 = vsel %vm278, %v766, %v767
      %v769 = vrot.slane %v236, 1
      %v770 = vsel %vm278, %v767, %v769
      %771 = vrot.lane.b32.xlu0 %v291, 28
      %v772 = vpop.permute.xlu0 %771
      %773 = vrot.lane.b32.xlu0 %v293, 28
      %v774 = vpop.permute.xlu0 %773
      %775 = vrot.lane.b32.xlu0 %v296, 28
      %v776 = vpop.permute.xlu0 %775
      %777 = vrot.lane.b32.xlu0 %v298, 28
      %v778 = vpop.permute.xlu0 %777
      %779 = vrot.lane.b32.xlu0 %v301, 28
      %v780 = vpop.permute.xlu0 %779
      %781 = vrot.lane.b32.xlu0 %v303, 28
      %v782 = vpop.permute.xlu0 %781
      %783 = vrot.lane.b32.xlu0 %v306, 28
      %v784 = vpop.permute.xlu0 %783
      %785 = vrot.lane.b32.xlu0 %v308, 28
      %v786 = vpop.permute.xlu0 %785
      %787 = vrot.lane.b32.xlu0 %v311, 28
      %v788 = vpop.permute.xlu0 %787
      %789 = vrot.lane.b32.xlu0 %v313, 28
      %v790 = vpop.permute.xlu0 %789
      %791 = vrot.lane.b32.xlu0 %v316, 28
      %v792 = vpop.permute.xlu0 %791
      %793 = vrot.lane.b32.xlu0 %v318, 28
      %v794 = vpop.permute.xlu0 %793
      %795 = vrot.lane.b32.xlu0 %v560, 28
      %v796 = vpop.permute.xlu0 %795
      %797 = vrot.lane.b32.xlu0 %v562, 28
      %v798 = vpop.permute.xlu0 %797
      %799 = vrot.lane.b32.xlu0 %v768, 28
      %v800 = vpop.permute.xlu0 %799
      %801 = vrot.lane.b32.xlu0 %v770, 28
      %v802 = vpop.permute.xlu0 %801
      %vm819 = vcmask 261344
      %820 = vst.msk [vmem:[#allocation2] sm:$0xff] %vm819, %v772
      %821 = vst.msk [vmem:[#allocation2 + $0x8] sm:$0xff] %vm819, %v774
      %822 = vst.msk [vmem:[#allocation2 + $0x10] sm:$0xff] %vm819, %v776
      %823 = vst.msk [vmem:[#allocation2 + $0x18] sm:$0xff] %vm819, %v778
      %824 = vst.msk [vmem:[#allocation2 + $0x20] sm:$0xff] %vm819, %v780
      %825 = vst.msk [vmem:[#allocation2 + $0x28] sm:$0xff] %vm819, %v782
      %826 = vst.msk [vmem:[#allocation2 + $0x30] sm:$0xff] %vm819, %v784
      %827 = vst.msk [vmem:[#allocation2 + $0x38] sm:$0xff] %vm819, %v786
      %828 = vst.msk [vmem:[#allocation2 + $0x40] sm:$0xff] %vm819, %v788
      %829 = vst.msk [vmem:[#allocation2 + $0x48] sm:$0xff] %vm819, %v790
      %830 = vst.msk [vmem:[#allocation2 + $0x50] sm:$0xff] %vm819, %v792
      %831 = vst.msk [vmem:[#allocation2 + $0x58] sm:$0xff] %vm819, %v794
      %832 = vst.msk [vmem:[#allocation2 + $0x60] sm:$0xff] %vm819, %v796
      %833 = vst.msk [vmem:[#allocation2 + $0x68] sm:$0xff] %vm819, %v798
      %834 = vst.msk [vmem:[#allocation2 + $0x70] sm:$0xff] %vm819, %v800
      %835 = vst.msk [vmem:[#allocation2 + $0x78] sm:$0xff] %vm819, %v802
      %v836 = vrot.slane %v234, 2
      %v837 = vrot.slane %v235, 2
      %v838 = vsel %vm384, %v836, %v837
      %v839 = vrot.slane %v236, 2
      %v840 = vsel %vm384, %v837, %v839
      %841 = vrot.lane.b32.xlu0 %v397, 32
      %v842 = vpop.permute.xlu0 %841
      %843 = vrot.lane.b32.xlu0 %v399, 32
      %v844 = vpop.permute.xlu0 %843
      %845 = vrot.lane.b32.xlu0 %v402, 32
      %v846 = vpop.permute.xlu0 %845
      %847 = vrot.lane.b32.xlu0 %v404, 32
      %v848 = vpop.permute.xlu0 %847
      %849 = vrot.lane.b32.xlu0 %v407, 32
      %v850 = vpop.permute.xlu0 %849
      %851 = vrot.lane.b32.xlu0 %v409, 32
      %v852 = vpop.permute.xlu0 %851
      %853 = vrot.lane.b32.xlu0 %v412, 32
      %v854 = vpop.permute.xlu0 %853
      %855 = vrot.lane.b32.xlu0 %v414, 32
      %v856 = vpop.permute.xlu0 %855
      %857 = vrot.lane.b32.xlu0 %v417, 32
      %v858 = vpop.permute.xlu0 %857
      %859 = vrot.lane.b32.xlu0 %v419, 32
      %v860 = vpop.permute.xlu0 %859
      %861 = vrot.lane.b32.xlu0 %v422, 32
      %v862 = vpop.permute.xlu0 %861
      %863 = vrot.lane.b32.xlu0 %v424, 32
      %v864 = vpop.permute.xlu0 %863
      %865 = vrot.lane.b32.xlu0 %v630, 32
      %v866 = vpop.permute.xlu0 %865
      %867 = vrot.lane.b32.xlu0 %v632, 32
      %v868 = vpop.permute.xlu0 %867
      %869 = vrot.lane.b32.xlu0 %v838, 32
      %v870 = vpop.permute.xlu0 %869
      %871 = vrot.lane.b32.xlu0 %v840, 32
      %v872 = vpop.permute.xlu0 %871
      %vm889 = vcmask 294144
      %890 = vst.msk [vmem:[#allocation2] sm:$0xff] %vm889, %v842
      %891 = vst.msk [vmem:[#allocation2 + $0x8] sm:$0xff] %vm889, %v844
      %892 = vst.msk [vmem:[#allocation2 + $0x10] sm:$0xff] %vm889, %v846
      %893 = vst.msk [vmem:[#allocation2 + $0x18] sm:$0xff] %vm889, %v848
      %894 = vst.msk [vmem:[#allocation2 + $0x20] sm:$0xff] %vm889, %v850
      %895 = vst.msk [vmem:[#allocation2 + $0x28] sm:$0xff] %vm889, %v852
      %896 = vst.msk [vmem:[#allocation2 + $0x30] sm:$0xff] %vm889, %v854
      %897 = vst.msk [vmem:[#allocation2 + $0x38] sm:$0xff] %vm889, %v856
      %898 = vst.msk [vmem:[#allocation2 + $0x40] sm:$0xff] %vm889, %v858
      %899 = vst.msk [vmem:[#allocation2 + $0x48] sm:$0xff] %vm889, %v860
      %900 = vst.msk [vmem:[#allocation2 + $0x50] sm:$0xff] %vm889, %v862
      %901 = vst.msk [vmem:[#allocation2 + $0x58] sm:$0xff] %vm889, %v864
      %902 = vst.msk [vmem:[#allocation2 + $0x60] sm:$0xff] %vm889, %v866
      %903 = vst.msk [vmem:[#allocation2 + $0x68] sm:$0xff] %vm889, %v868
      %904 = vst.msk [vmem:[#allocation2 + $0x70] sm:$0xff] %vm889, %v870
      %905 = vst.msk [vmem:[#allocation2 + $0x78] sm:$0xff] %vm889, %v872
      %v906 = vld [vmem:[#allocation2] sm:$0xff]
      %v907 = vld [vmem:[#allocation2 + $0x8] sm:$0xff]
      %v908 = vld [vmem:[#allocation2 + $0x10] sm:$0xff]
      %v909 = vld [vmem:[#allocation2 + $0x18] sm:$0xff]
      %v910 = vld [vmem:[#allocation2 + $0x20] sm:$0xff]
      %v911 = vld [vmem:[#allocation2 + $0x28] sm:$0xff]
      %v912 = vld [vmem:[#allocation2 + $0x30] sm:$0xff]
      %v913 = vld [vmem:[#allocation2 + $0x38] sm:$0xff]
      %v914 = vld [vmem:[#allocation2 + $0x40] sm:$0xff]
      %v915 = vld [vmem:[#allocation2 + $0x48] sm:$0xff]
      %v916 = vld [vmem:[#allocation2 + $0x50] sm:$0xff]
      %v917 = vld [vmem:[#allocation2 + $0x58] sm:$0xff]
      %v918 = vld [vmem:[#allocation2 + $0x60] sm:$0xff]
      %v919 = vld [vmem:[#allocation2 + $0x68] sm:$0xff]
      %v920 = vld [vmem:[#allocation2 + $0x70] sm:$0xff]
      %v921 = vld [vmem:[#allocation2 + $0x78] sm:$0xff]
      %v922 = vld [vmem:[%s0] sm:$0xff]
      %v923 = vld [vmem:[%s0 + $0x8] sm:$0xff]
      %v924 = vld [vmem:[%s0 + $0x10] sm:$0xff]
      %v925 = vld [vmem:[%s0 + $0x18] sm:$0xff]
      %v926 = vld [vmem:[%s0 + $0x20] sm:$0xf]
      %v927 = vld [vmem:[%s1] sm:$0x1]
      %v929 = vlaneseq
      %v930 = vshrl.u32 %v929, 7
      %v931 = vsub.s32 0, %v930
      %v932 = vrot.slane %v927, %v931
      %vm934 = vcmask 293888
      %v936 = vsel %vm934, %v906, 0
      %v939 = vsel %vm934, %v907, 0
      %v942 = vsel %vm934, %v908, 0
      %v945 = vsel %vm934, %v909, 0
      %v948 = vsel %vm934, %v910, 0
      %v951 = vsel %vm934, %v911, 0
      %v954 = vsel %vm934, %v912, 0
      %v957 = vsel %vm934, %v913, 0
      %v960 = vsel %vm934, %v914, 0
      %v963 = vsel %vm934, %v915, 0
      %v966 = vsel %vm934, %v916, 0
      %v969 = vsel %vm934, %v917, 0
      %v972 = vsel %vm934, %v918, 0
      %v975 = vsel %vm934, %v919, 0
      %v978 = vsel %vm934, %v920, 0
      %v981 = vsel %vm934, %v921, 0
      %vm983 = vcmask 1043456
      %v985 = vsel %vm983, %v926, 0
      %987 = vmatprep.subr.mxu0 0.0
      %988 = vmatpush1.msra.mxu0 %v922
      %989 = vmatprep.subr.mxu0 0.0
      %990 = vmatpush1.msra.mxu0 %v923
      %991 = vmatprep.subr.mxu0 0.0
      %992 = vmatpush1.msra.mxu0 %v924
      %993 = vmatprep.subr.mxu0 0.0
      %994 = vmatpush1.msra.mxu0 %v925
      %995 = vmatprep.subr.mxu0 0.0
      %996 = vmatpush1.msra.mxu0 %v985
      %997 = vmatprep.subr.mxu0 0.0
      %998 = vmatpush1.msra.mxu0 0.0
      %999 = vmatprep.subr.mxu0 0.0
      %1000 = vmatpush1.msra.mxu0 0.0
      %1001 = vmatprep.subr.mxu0 0.0
      %1002 = vmatpush1.msra.mxu0 0.0
      %1003 = vmatprep.subr.mxu0 0.0
      %1004 = vmatpush1.msra.mxu0 0.0
      %1005 = vmatprep.subr.mxu0 0.0
      %1006 = vmatpush1.msra.mxu0 0.0
      %1007 = vmatprep.subr.mxu0 0.0
      %1008 = vmatpush1.msra.mxu0 0.0
      %1009 = vmatprep.subr.mxu0 0.0
      %1010 = vmatpush1.msra.mxu0 0.0
      %1011 = vmatprep.subr.mxu0 0.0
      %1012 = vmatpush1.msra.mxu0 0.0
      %1013 = vmatprep.subr.mxu0 0.0
      %1014 = vmatpush1.msra.mxu0 0.0
      %1015 = vmatprep.subr.mxu0 0.0
      %1016 = vmatpush1.msra.mxu0 0.0
      %1017 = vmatprep.subr.mxu0 0.0
      %1018 = vmatpush1.msra.mxu0 0.0
      %1019 = vmatprep.subr.mxu0 0.0
      %1020 = vmatpush1.msra.mxu0 0.0
      %1021 = vmatprep.subr.mxu0 0.0
      %1022 = vmatpush1.msra.mxu0 0.0
      %1023 = vmatprep.subr.mxu0 0.0
      %1024 = vmatpush1.msra.mxu0 0.0
      %1025 = vmatprep.subr.mxu0 0.0
      %1026 = vmatpush1.msra.mxu0 0.0
      %1027 = vmatprep.subr.mxu0 0.0
      %1028 = vmatpush1.msra.mxu0 0.0
      %1029 = vmatprep.subr.mxu0 0.0
      %1030 = vmatpush1.msra.mxu0 0.0
      %1031 = vmatprep.subr.mxu0 0.0
      %1032 = vmatpush1.msra.mxu0 0.0
      %1033 = vmatprep.subr.mxu0 0.0
      %1034 = vmatpush1.msra.mxu0 0.0
      %1035 = vmatprep.subr.mxu0 0.0
      %1036 = vmatpush1.msra.mxu0 0.0
      %1037 = vmatprep.subr.mxu0 0.0
      %1038 = vmatpush1.msra.mxu0 0.0
      %1039 = vmatprep.subr.mxu0 0.0
      %1040 = vmatpush1.msra.mxu0 0.0
      %1041 = vmatprep.subr.mxu0 0.0
      %1042 = vmatpush1.msra.mxu0 0.0
      %1043 = vmatprep.subr.mxu0 0.0
      %1044 = vmatpush1.msra.mxu0 0.0
      %1045 = vmatprep.subr.mxu0 0.0
      %1046 = vmatpush1.msra.mxu0 0.0
      %1047 = vmatprep.subr.mxu0 0.0
      %1048 = vmatpush1.msra.mxu0 0.0
      %1049 = vmatprep.subr.mxu0 0.0
      %1050 = vmatpush1.msra.mxu0 0.0
      %1051 = vmatprep.mubr.f32.mxu0 0.0
      %1052 = vmatmul.mubr.f32.gmra.mrb[0].mxu0 %v936
      %v1053 = vpop.f32.mrb[0].mxu0
      %v1054 = vadd.f32 %v932, %v1053
      %v1055 = vpop.f32.mrb[0].mxu0
      %1056 = vmatprep.mubr.f32.mxu0 0.0
      %1057 = vmatmul.mubr.f32.gmra.mrb[0].mxu0 %v939
      %v1058 = vpop.f32.mrb[0].mxu0
      %v1059 = vadd.f32 %v932, %v1058
      %v1060 = vpop.f32.mrb[0].mxu0
      %1061 = vmatprep.mubr.f32.mxu0 0.0
      %1062 = vmatmul.mubr.f32.gmra.mrb[0].mxu0 %v942
      %v1063 = vpop.f32.mrb[0].mxu0
      %v1064 = vadd.f32 %v932, %v1063
      %v1065 = vpop.f32.mrb[0].mxu0
      %1066 = vmatprep.mubr.f32.mxu0 0.0
      %1067 = vmatmul.mubr.f32.gmra.mrb[0].mxu0 %v945
      %v1068 = vpop.f32.mrb[0].mxu0
      %v1069 = vadd.f32 %v932, %v1068
      %v1070 = vpop.f32.mrb[0].mxu0
      %1071 = vmatprep.mubr.f32.mxu0 0.0
      %1072 = vmatmul.mubr.f32.gmra.mrb[0].mxu0 %v948
      %v1073 = vpop.f32.mrb[0].mxu0
      %v1074 = vadd.f32 %v932, %v1073
      %v1075 = vpop.f32.mrb[0].mxu0
      %1076 = vmatprep.mubr.f32.mxu0 0.0
      %1077 = vmatmul.mubr.f32.gmra.mrb[0].mxu0 %v951
      %v1078 = vpop.f32.mrb[0].mxu0
      %v1079 = vadd.f32 %v932, %v1078
      %v1080 = vpop.f32.mrb[0].mxu0
      %1081 = vmatprep.mubr.f32.mxu0 0.0
      %1082 = vmatmul.mubr.f32.gmra.mrb[0].mxu0 %v954
      %v1083 = vpop.f32.mrb[0].mxu0
      %v1084 = vadd.f32 %v932, %v1083
      %v1085 = vpop.f32.mrb[0].mxu0
      %1086 = vmatprep.mubr.f32.mxu0 0.0
      %1087 = vmatmul.mubr.f32.gmra.mrb[0].mxu0 %v957
      %v1088 = vpop.f32.mrb[0].mxu0
      %v1089 = vadd.f32 %v932, %v1088
      %v1090 = vpop.f32.mrb[0].mxu0
      %1091 = vmatprep.mubr.f32.mxu0 0.0
      %1092 = vmatmul.mubr.f32.gmra.mrb[0].mxu0 %v960
      %v1093 = vpop.f32.mrb[0].mxu0
      %v1094 = vadd.f32 %v932, %v1093
      %v1095 = vpop.f32.mrb[0].mxu0
      %1096 = vmatprep.mubr.f32.mxu0 0.0
      %1097 = vmatmul.mubr.f32.gmra.mrb[0].mxu0 %v963
      %v1098 = vpop.f32.mrb[0].mxu0
      %v1099 = vadd.f32 %v932, %v1098
      %v1100 = vpop.f32.mrb[0].mxu0
      %1101 = vmatprep.mubr.f32.mxu0 0.0
      %1102 = vmatmul.mubr.f32.gmra.mrb[0].mxu0 %v966
      %v1103 = vpop.f32.mrb[0].mxu0
      %v1104 = vadd.f32 %v932, %v1103
      %v1105 = vpop.f32.mrb[0].mxu0
      %1106 = vmatprep.mubr.f32.mxu0 0.0
      %1107 = vmatmul.mubr.f32.gmra.mrb[0].mxu0 %v969
      %v1108 = vpop.f32.mrb[0].mxu0
      %v1109 = vadd.f32 %v932, %v1108
      %v1110 = vpop.f32.mrb[0].mxu0
      %1111 = vmatprep.mubr.f32.mxu0 0.0
      %1112 = vmatmul.mubr.f32.gmra.mrb[0].mxu0 %v972
      %v1113 = vpop.f32.mrb[0].mxu0
      %v1114 = vadd.f32 %v932, %v1113
      %v1115 = vpop.f32.mrb[0].mxu0
      %1116 = vmatprep.mubr.f32.mxu0 0.0
      %1117 = vmatmul.mubr.f32.gmra.mrb[0].mxu0 %v975
      %v1118 = vpop.f32.mrb[0].mxu0
      %v1119 = vadd.f32 %v932, %v1118
      %v1120 = vpop.f32.mrb[0].mxu0
      %1121 = vmatprep.mubr.f32.mxu0 0.0
      %1122 = vmatmul.mubr.f32.gmra.mrb[0].mxu0 %v978
      %v1123 = vpop.f32.mrb[0].mxu0
      %v1124 = vadd.f32 %v932, %v1123
      %v1125 = vpop.f32.mrb[0].mxu0
      %1126 = vmatprep.mubr.f32.mxu0 0.0
      %1127 = vmatmul.mubr.f32.gmra.mrb[0].mxu0 %v981
      %v1128 = vpop.f32.mrb[0].mxu0
      %v1129 = vadd.f32 %v932, %v1128
      %v1130 = vpop.f32.mrb[0].mxu0
      %1131 = vdwg.mxu0
      %v1132 = vmax.f32 %v1054, 0.0
      %v1133 = vmax.f32 %v1059, 0.0
      %v1134 = vmax.f32 %v1064, 0.0
      %v1135 = vmax.f32 %v1069, 0.0
      %v1136 = vmax.f32 %v1074, 0.0
      %v1137 = vmax.f32 %v1079, 0.0
      %v1138 = vmax.f32 %v1084, 0.0
      %v1139 = vmax.f32 %v1089, 0.0
      %v1140 = vmax.f32 %v1094, 0.0
      %v1141 = vmax.f32 %v1099, 0.0
      %v1142 = vmax.f32 %v1104, 0.0
      %v1143 = vmax.f32 %v1109, 0.0
      %v1144 = vmax.f32 %v1114, 0.0
      %v1145 = vmax.f32 %v1119, 0.0
      %v1146 = vmax.f32 %v1124, 0.0
      %v1147 = vmax.f32 %v1129, 0.0
      %1148 = vst [vmem:[%s206] sm:$0xff] %v1132
      %1149 = vst [vmem:[%s206 + $0x8] sm:$0xff] %v1133
      %1150 = vst [vmem:[%s206 + $0x10] sm:$0xff] %v1134
      %1151 = vst [vmem:[%s206 + $0x18] sm:$0xff] %v1135
      %1152 = vst [vmem:[%s206 + $0x20] sm:$0xff] %v1136
      %1153 = vst [vmem:[%s206 + $0x28] sm:$0xff] %v1137
      %1154 = vst [vmem:[%s206 + $0x30] sm:$0xff] %v1138
      %1155 = vst [vmem:[%s206 + $0x38] sm:$0xff] %v1139
      %1156 = vst [vmem:[%s206 + $0x40] sm:$0xff] %v1140
      %1157 = vst [vmem:[%s206 + $0x48] sm:$0xff] %v1141
      %1158 = vst [vmem:[%s206 + $0x50] sm:$0xff] %v1142
      %1159 = vst [vmem:[%s206 + $0x58] sm:$0xff] %v1143
      %1160 = vst [vmem:[%s206 + $0x60] sm:$0xff] %v1144
      %1161 = vst [vmem:[%s206 + $0x68] sm:$0xff] %v1145
      %1162 = vst [vmem:[%s206 + $0x70] sm:$0xff] %v1146
      %1163 = vst [vmem:[%s206 + $0x78] sm:$0xff] %v1147
      %p1164 = scmp.lt.s32.totalorder %s18, 1
      %s1165 = scalar_select %p1164, %s18, 1
      %p1166 = scmp.lt.s32.totalorder %s19, 1
      %s1167 = scalar_select %p1166, %s19, 1
      %s1168 = smul.addr %s1167, 16
      %s1169 = smul.addr %s1165, 32
      %s1170 = sadd.s32 %s1168, %s1169
      %s1171 = smul.addr %s1170, 8
      %s1172 = scalar_lea.vmem %s3, %s1171
      // Predicated region
      $region33: #{basic_conv2d_relu.1} parent=31 // pred_check
        %p1173 = pneg %p116
      $region34: #{basic_conv2d_relu.1} parent=31 // pred_check_branch
        %1175 = sbr.rel (%p1173) target = $region36
      $region35: #{basic_conv2d_relu.1} parent=31 // pred_region
        _
      $region36: #{basic_conv2d_relu.1} parent=31 // pred_fallthru
        _
    $region32: #{basic_conv2d_relu.1} parent=5 // pred_fallthru
      _
    %p1176 = scmp.le.s32.totalorder 2, %s9
    // Predicated region
    $region37: #{basic_conv2d_relu.1} parent=5 // pred_check
      %p1177 = pneg %p1176
    $region38: #{basic_conv2d_relu.1} parent=5 // pred_check_branch
      %1179 = sbr.rel (%p1177) target = $region40
    $region39: #{basic_conv2d_relu.1} parent=5 // pred_region
      %s1180 = ssub.s32 %s9, 2
      // Predicated region
      $region41: #{basic_conv2d_relu.1} parent=39 // pred_check
        %p1181 = pneg %p122
      $region42: #{basic_conv2d_relu.1} parent=39 // pred_check_branch
        %1183 = sbr.rel (%p1181) target = $region44
      $region43: #{basic_conv2d_relu.1} parent=39 // pred_region
        %p1184 = scmp.lt.s32.totalorder %s20, 1
        %s1185 = scalar_select %p1184, %s20, 1
        %p1186 = scmp.lt.s32.totalorder %s21, 1
        %s1187 = scalar_select %p1186, %s21, 1
        %s1188 = smul.addr %s1187, 16
        %s1189 = smul.addr %s1185, 32
        %s1190 = sadd.s32 %s1188, %s1189
        %s1191 = smul.addr %s1190, 8
        %s1192 = scalar_lea.vmem %s3, %s1191
      $region44: #{basic_conv2d_relu.1} parent=39 // pred_fallthru
        _
    $region40: #{basic_conv2d_relu.1} parent=5 // pred_fallthru
      _
  $region6: #{basic_conv2d_relu.1} parent=0 // loop_footer
    %s13 = sadd.s32 1, %s9
  $region7: #{basic_conv2d_relu.1} parent=0 // loop_footer_branch
    %8 = sbr.rel target = $region3
  $region8: #{basic_conv2d_relu.1} parent=0 // loop_exit
    _

</llo_original>
